<compile_context>
chip_gen: v6e
topology: v6e:2x2x1
jax: 0.10.0
libtpu: 0.0.40
codegen_flags: <defaults>
</compile_context>

<pallas_src>
import functools

import jax
import jax.numpy as jnp
from jax import lax
from jax.experimental import pallas as pl
from jax.experimental.pallas import tpu as pltpu


def _sigmoid(z):
    # 1 / (1 + exp(-z)); clip keeps exp finite so the approx EUP reciprocal
    # never has to handle inf. exp + reciprocal both run on the EUP slot.
    z = jnp.clip(z, -30.0, 30.0)
    return pl.reciprocal(1.0 + jnp.exp(-z), approx=True)


def mlp_kernel(x_ref,
               w1_ref, b1_ref,
               w2_ref, b2_ref,
               w3_ref, b3_ref,
               w4c_ref, b4_ref,
               o_ref):
    # x_ref: [block_b, 64] (original dtype, batch-major straight from HBM).
    # Weights are PyTorch-oriented [out, in] in bf16; biases [out, 1] f32.
    x_bf = x_ref[...].astype(jnp.bfloat16)                         # [B, 64]

    # Layer 1 (64 -> 32): contract the shared feature axis (last dim of both
    # operands) so the result is already feature-major [32, block_b]; the
    # layout fix-up lands on XLU/MXU slots instead of a separate HBM pass.
    z1 = lax.dot_general(w1_ref[...], x_bf, (((1,), (1,)), ((), ())),
                         preferred_element_type=jnp.float32)       # [32, B]
    h = _sigmoid(z1 + b1_ref[...])

    # Layer 2 (32 -> 16), bf16 MXU, f32 accumulate.
    z2 = jnp.dot(w2_ref[...], h.astype(jnp.bfloat16),
                 preferred_element_type=jnp.float32)               # [16, B]
    h = _sigmoid(z2 + b2_ref[...])

    # Layer 3 (16 -> 4).
    z3 = jnp.dot(w3_ref[...], h.astype(jnp.bfloat16),
                 preferred_element_type=jnp.float32)               # [4, B]
    h = _sigmoid(z3 + b3_ref[...])

    # Layer 4 (4 -> 1): VPU multiply + sublane reduction; an MXU matmul with
    # M=N=1 would be >99% padding.
    z4 = jnp.sum(w4c_ref[...] * h, axis=0, keepdims=True) + b4_ref[...]
    o_ref[...] = _sigmoid(z4).astype(o_ref.dtype)                  # [1, B]


def _cdiv(a, b):
    return (a + b - 1) // b


def _round_up(n, m):
    return _cdiv(n, m) * m


def _choose_tiling(batch, target_block):
    """Pick (block_b, padded_batch): block_b % 128 == 0, >=2 grid steps when
    the 128-padded batch allows it (v7x megacore), block_b <= ~target."""
    bp = _round_up(batch, 128)
    n_steps = max(2, _cdiv(bp, target_block)) if bp >= 256 else 1
    block_b = _round_up(_cdiv(bp, n_steps), 128)
    return block_b, n_steps * block_b


@functools.partial(jax.jit, static_argnames=("block_b", "bp"))
def _forward_impl(x, params, *, block_b, bp):
    """x: [B, 64] (any float dtype) -> [1, bp] f32 (feature-major logits)."""
    B, d_in = x.shape
    assert d_in == 64

    (w1, b1), (w2, b2), (w3, b3), (w4, b4) = params
    # One-time (tiny) param prep: bf16 weights for the MXU, f32 biases,
    # column-form last layer for the VPU/XLU path.
    w1b = w1.astype(jnp.bfloat16)
    w2b = w2.astype(jnp.bfloat16)
    w3b = w3.astype(jnp.bfloat16)
    w4c = jnp.transpose(w4).astype(jnp.float32)        # [4, 1]
    b1f, b2f, b3f, b4f = (b.astype(jnp.float32) for b in (b1, b2, b3, b4))

    if bp != B:
        x = jnp.pad(x, ((0, bp - B), (0, 0)))

    def full_spec(arr):
        nd = arr.ndim
        return pl.BlockSpec(arr.shape, lambda i: (0,) * nd)

    grid = (bp // block_b,)

    return pl.pallas_call(
        mlp_kernel,
        out_shape=jax.ShapeDtypeStruct((1, bp), jnp.float32),
        grid_spec=pltpu.PrefetchScalarGridSpec(
            num_scalar_prefetch=0,
            grid=grid,
            in_specs=[
                pl.BlockSpec((block_b, 64), lambda i: (i, 0)),   # x tile
                full_spec(w1b), full_spec(b1f),
                full_spec(w2b), full_spec(b2f),
                full_spec(w3b), full_spec(b3f),
                full_spec(w4c), full_spec(b4f),
            ],
            # Lane-dense output tiles -> unmasked vst.
            out_specs=pl.BlockSpec((1, block_b), lambda i: (0, i)),
        ),
        compiler_params=pltpu.CompilerParams(
            dimension_semantics=("parallel",),
            # Clears v5e's 16 MiB scoped default at block_b=16384 while
            # staying well under v7x's 64 MiB physical VMEM.
            vmem_limit_bytes=40 * 1024 * 1024,
        ),
    )(x, w1b, b1f, w2b, b2f, w3b, b3f, w4c, b4f)


def logistic_model_forward(x, params, *, target_block_b=16384):
    """PyTorch-equivalent forward: x [B, 64] float -> [B, 1] float32."""
    B, d_in = x.shape
    assert d_in == 64
    block_b, bp = _choose_tiling(B, target_block_b)
    out = _forward_impl(x, params, block_b=block_b, bp=bp)
    return out[0, :B].reshape(B, 1)


def init_params(key):
    """nn.Linear-style init. Weights stored PyTorch-oriented [out, in]
    (uniform(-1/sqrt(in), 1/sqrt(in))), biases as [out, 1]."""
    dims = [(64, 32), (32, 16), (16, 4), (4, 1)]
    params = []
    for (d_in, d_out) in dims:
        key, kw, kb = jax.random.split(key, 3)
        bound = 1.0 / jnp.sqrt(jnp.float32(d_in))
        w = jax.random.uniform(kw, (d_out, d_in), jnp.float32, -bound, bound)
        b = jax.random.uniform(kb, (d_out, 1), jnp.float32, -bound, bound)
        params.append((w, b))
    return params


def reference_forward(x, params):
    h = x
    for (w, b) in params:
        h = jax.nn.sigmoid(h @ w.T + b.T)
    return h


if __name__ == "__main__":
    key = jax.random.PRNGKey(0)
    kx, kp = jax.random.split(key)

    B = 512
    x = jax.random.normal(kx, (B, 64), jnp.float32)
    params = init_params(kp)

    # Tiling chooser gives block_b=256, grid=(2,): exercises pipelining and
    # the 2-TC sharding path even at this small demo size.
    out = logistic_model_forward(x, params)
    jax.block_until_ready(out)

    ref = reference_forward(x, params)
    assert out.shape == (B, 1)
    # bf16 weights/activations + approx EUP reciprocal => relaxed tolerance.
    assert jnp.allclose(out, ref, atol=2e-2, rtol=2e-2), float(
        jnp.max(jnp.abs(out - ref)))

    print("KERNEL_OK")
</pallas_src>

<mosaic_0001>
module attributes {stable_mosaic.version = 11 : i64} {
  func.func @mlp_kernel(%arg0: i32, %arg1: memref<256x64xf32, #tpu.memory_space<vmem>>, %arg2: memref<32x64xbf16, #tpu.memory_space<vmem>>, %arg3: memref<32x1xf32, #tpu.memory_space<vmem>>, %arg4: memref<16x32xbf16, #tpu.memory_space<vmem>>, %arg5: memref<16x1xf32, #tpu.memory_space<vmem>>, %arg6: memref<4x16xbf16, #tpu.memory_space<vmem>>, %arg7: memref<4x1xf32, #tpu.memory_space<vmem>>, %arg8: memref<4x1xf32, #tpu.memory_space<vmem>>, %arg9: memref<1x1xf32, #tpu.memory_space<vmem>>, %arg10: memref<1x256xf32, #tpu.memory_space<vmem>>) attributes {dimension_semantics = [#tpu.dimension_semantics<parallel>], iteration_bounds = array<i64: 2>, scalar_prefetch = 0 : i64, scratch_operands = 0 : i64, tpu.core_type = #tpu.core_type<tc>, window_params = [{transform_indices = @transform_0, window_bounds = array<i64: 256, 64>}, {pipeline_mode = #tpu.pipeline_mode<synchronous>, transform_indices = @transform_1, window_bounds = array<i64: 32, 64>}, {pipeline_mode = #tpu.pipeline_mode<synchronous>, transform_indices = @transform_2, window_bounds = array<i64: 32, 1>}, {pipeline_mode = #tpu.pipeline_mode<synchronous>, transform_indices = @transform_3, window_bounds = array<i64: 16, 32>}, {pipeline_mode = #tpu.pipeline_mode<synchronous>, transform_indices = @transform_4, window_bounds = array<i64: 16, 1>}, {pipeline_mode = #tpu.pipeline_mode<synchronous>, transform_indices = @transform_5, window_bounds = array<i64: 4, 16>}, {pipeline_mode = #tpu.pipeline_mode<synchronous>, transform_indices = @transform_6, window_bounds = array<i64: 4, 1>}, {pipeline_mode = #tpu.pipeline_mode<synchronous>, transform_indices = @transform_7, window_bounds = array<i64: 4, 1>}, {pipeline_mode = #tpu.pipeline_mode<synchronous>, transform_indices = @transform_8, window_bounds = array<i64: 1, 1>}, {transform_indices = @transform_9, window_bounds = array<i64: 1, 256>}]} {
    %c0 = arith.constant 0 : index
    %c0_0 = arith.constant 0 : index
    %0 = vector.load %arg1[%c0, %c0_0] : memref<256x64xf32, #tpu.memory_space<vmem>>, vector<256x64xf32>
    %1 = arith.truncf %0 : vector<256x64xf32> to vector<256x64xbf16>
    %c0_1 = arith.constant 0 : index
    %c0_2 = arith.constant 0 : index
    %2 = vector.load %arg2[%c0_1, %c0_2] : memref<32x64xbf16, #tpu.memory_space<vmem>>, vector<32x64xbf16>
    %cst = arith.constant dense<0.000000e+00> : vector<32x256xf32>
    %3 = tpu.matmul %2, %1, %cst {dimension_numbers = #tpu.dot_dimension_numbers<[1], [1], [0], [0], [0, 0, 1, 0], [], []>} : vector<32x64xbf16>, vector<256x64xbf16>, vector<32x256xf32> -> vector<32x256xf32>
    %c0_3 = arith.constant 0 : index
    %c0_4 = arith.constant 0 : index
    %4 = vector.load %arg3[%c0_3, %c0_4] : memref<32x1xf32, #tpu.memory_space<vmem>>, vector<32x1xf32>
    %5 = vector.broadcast %4 : vector<32x1xf32> to vector<32x256xf32>
    %6 = arith.addf %3, %5 : vector<32x256xf32>
    %cst_5 = arith.constant -3.000000e+01 : f32
    %cst_6 = arith.constant 3.000000e+01 : f32
    %7 = vector.broadcast %cst_5 : f32 to vector<32x256xf32>
    %8 = arith.maximumf %7, %6 : vector<32x256xf32>
    %9 = vector.broadcast %cst_6 : f32 to vector<32x256xf32>
    %10 = arith.minimumf %9, %8 : vector<32x256xf32>
    %cst_7 = arith.constant 0.000000e+00 : f32
    %11 = vector.broadcast %cst_7 : f32 to vector<32x256xf32>
    %12 = arith.subf %11, %10 : vector<32x256xf32>
    %13 = math.exp %12 : vector<32x256xf32>
    %cst_8 = arith.constant 1.000000e+00 : f32
    %14 = vector.broadcast %cst_8 : f32 to vector<32x256xf32>
    %15 = arith.addf %14, %13 : vector<32x256xf32>
    %16 = tpu.reciprocal %15 {approx = true} : vector<32x256xf32> -> vector<32x256xf32>
    %c0_9 = arith.constant 0 : index
    %c0_10 = arith.constant 0 : index
    %17 = vector.load %arg4[%c0_9, %c0_10] : memref<16x32xbf16, #tpu.memory_space<vmem>>, vector<16x32xbf16>
    %18 = arith.truncf %16 : vector<32x256xf32> to vector<32x256xbf16>
    %cst_11 = arith.constant dense<0.000000e+00> : vector<16x256xf32>
    %19 = tpu.matmul %17, %18, %cst_11 {dimension_numbers = #tpu.dot_dimension_numbers<[1], [0], [0], [1], [0, 0, 1, 1], [], []>} : vector<16x32xbf16>, vector<32x256xbf16>, vector<16x256xf32> -> vector<16x256xf32>
    %c0_12 = arith.constant 0 : index
    %c0_13 = arith.constant 0 : index
    %20 = vector.load %arg5[%c0_12, %c0_13] : memref<16x1xf32, #tpu.memory_space<vmem>>, vector<16x1xf32>
    %21 = vector.broadcast %20 : vector<16x1xf32> to vector<16x256xf32>
    %22 = arith.addf %19, %21 : vector<16x256xf32>
    %cst_14 = arith.constant -3.000000e+01 : f32
    %cst_15 = arith.constant 3.000000e+01 : f32
    %23 = vector.broadcast %cst_14 : f32 to vector<16x256xf32>
    %24 = arith.maximumf %23, %22 : vector<16x256xf32>
    %25 = vector.broadcast %cst_15 : f32 to vector<16x256xf32>
    %26 = arith.minimumf %25, %24 : vector<16x256xf32>
    %cst_16 = arith.constant 0.000000e+00 : f32
    %27 = vector.broadcast %cst_16 : f32 to vector<16x256xf32>
    %28 = arith.subf %27, %26 : vector<16x256xf32>
    %29 = math.exp %28 : vector<16x256xf32>
    %cst_17 = arith.constant 1.000000e+00 : f32
    %30 = vector.broadcast %cst_17 : f32 to vector<16x256xf32>
    %31 = arith.addf %30, %29 : vector<16x256xf32>
    %32 = tpu.reciprocal %31 {approx = true} : vector<16x256xf32> -> vector<16x256xf32>
    %c0_18 = arith.constant 0 : index
    %c0_19 = arith.constant 0 : index
    %33 = vector.load %arg6[%c0_18, %c0_19] : memref<4x16xbf16, #tpu.memory_space<vmem>>, vector<4x16xbf16>
    %34 = arith.truncf %32 : vector<16x256xf32> to vector<16x256xbf16>
    %cst_20 = arith.constant dense<0.000000e+00> : vector<4x256xf32>
    %35 = tpu.matmul %33, %34, %cst_20 {dimension_numbers = #tpu.dot_dimension_numbers<[1], [0], [0], [1], [0, 0, 1, 1], [], []>} : vector<4x16xbf16>, vector<16x256xbf16>, vector<4x256xf32> -> vector<4x256xf32>
    %c0_21 = arith.constant 0 : index
    %c0_22 = arith.constant 0 : index
    %36 = vector.load %arg7[%c0_21, %c0_22] : memref<4x1xf32, #tpu.memory_space<vmem>>, vector<4x1xf32>
    %37 = vector.broadcast %36 : vector<4x1xf32> to vector<4x256xf32>
    %38 = arith.addf %35, %37 : vector<4x256xf32>
    %cst_23 = arith.constant -3.000000e+01 : f32
    %cst_24 = arith.constant 3.000000e+01 : f32
    %39 = vector.broadcast %cst_23 : f32 to vector<4x256xf32>
    %40 = arith.maximumf %39, %38 : vector<4x256xf32>
    %41 = vector.broadcast %cst_24 : f32 to vector<4x256xf32>
    %42 = arith.minimumf %41, %40 : vector<4x256xf32>
    %cst_25 = arith.constant 0.000000e+00 : f32
    %43 = vector.broadcast %cst_25 : f32 to vector<4x256xf32>
    %44 = arith.subf %43, %42 : vector<4x256xf32>
    %45 = math.exp %44 : vector<4x256xf32>
    %cst_26 = arith.constant 1.000000e+00 : f32
    %46 = vector.broadcast %cst_26 : f32 to vector<4x256xf32>
    %47 = arith.addf %46, %45 : vector<4x256xf32>
    %48 = tpu.reciprocal %47 {approx = true} : vector<4x256xf32> -> vector<4x256xf32>
    %c0_27 = arith.constant 0 : index
    %c0_28 = arith.constant 0 : index
    %49 = vector.load %arg8[%c0_27, %c0_28] : memref<4x1xf32, #tpu.memory_space<vmem>>, vector<4x1xf32>
    %50 = vector.broadcast %49 : vector<4x1xf32> to vector<4x256xf32>
    %51 = arith.mulf %50, %48 : vector<4x256xf32>
    %cst_29 = arith.constant dense<0.000000e+00> : vector<256xf32>
    %52 = vector.multi_reduction <add>, %51, %cst_29 [0] : vector<4x256xf32> to vector<256xf32>
    %53 = vector.shape_cast %52 : vector<256xf32> to vector<1x256xf32>
    %c0_30 = arith.constant 0 : index
    %c0_31 = arith.constant 0 : index
    %54 = vector.load %arg9[%c0_30, %c0_31] : memref<1x1xf32, #tpu.memory_space<vmem>>, vector<1x1xf32>
    %55 = vector.broadcast %54 : vector<1x1xf32> to vector<1x256xf32>
    %56 = arith.addf %53, %55 : vector<1x256xf32>
    %cst_32 = arith.constant -3.000000e+01 : f32
    %cst_33 = arith.constant 3.000000e+01 : f32
    %57 = vector.broadcast %cst_32 : f32 to vector<1x256xf32>
    %58 = arith.maximumf %57, %56 : vector<1x256xf32>
    %59 = vector.broadcast %cst_33 : f32 to vector<1x256xf32>
    %60 = arith.minimumf %59, %58 : vector<1x256xf32>
    %cst_34 = arith.constant 0.000000e+00 : f32
    %61 = vector.broadcast %cst_34 : f32 to vector<1x256xf32>
    %62 = arith.subf %61, %60 : vector<1x256xf32>
    %63 = math.exp %62 : vector<1x256xf32>
    %cst_35 = arith.constant 1.000000e+00 : f32
    %64 = vector.broadcast %cst_35 : f32 to vector<1x256xf32>
    %65 = arith.addf %64, %63 : vector<1x256xf32>
    %66 = tpu.reciprocal %65 {approx = true} : vector<1x256xf32> -> vector<1x256xf32>
    %c0_36 = arith.constant 0 : index
    %c0_37 = arith.constant 0 : index
    %67 = vector.load %arg10[%c0_36, %c0_37] : memref<1x256xf32, #tpu.memory_space<vmem>>, vector<1x256xf32>
    tpu.vector_store %arg10[%c0_36, %c0_37], %66 {strides = array<i32>} : memref<1x256xf32, #tpu.memory_space<vmem>>, vector<1x256xf32>,
    return
  }
  func.func @transform_0(%arg0: i32) -> (i32, i32) {
    %c0_i32 = arith.constant 0 : i32
    %c0_i32_0 = arith.constant 0 : i32
    return %arg0, %c0_i32 : i32, i32
  }
  func.func @transform_1(%arg0: i32) -> (i32, i32) {
    %c0_i32 = arith.constant 0 : i32
    %c0_i32_0 = arith.constant 0 : i32
    %c0_i32_1 = arith.constant 0 : i32
    return %c0_i32, %c0_i32_0 : i32, i32
  }
  func.func @transform_2(%arg0: i32) -> (i32, i32) {
    %c0_i32 = arith.constant 0 : i32
    %c0_i32_0 = arith.constant 0 : i32
    %c0_i32_1 = arith.constant 0 : i32
    return %c0_i32, %c0_i32_0 : i32, i32
  }
  func.func @transform_3(%arg0: i32) -> (i32, i32) {
    %c0_i32 = arith.constant 0 : i32
    %c0_i32_0 = arith.constant 0 : i32
    %c0_i32_1 = arith.constant 0 : i32
    return %c0_i32, %c0_i32_0 : i32, i32
  }
  func.func @transform_4(%arg0: i32) -> (i32, i32) {
    %c0_i32 = arith.constant 0 : i32
    %c0_i32_0 = arith.constant 0 : i32
    %c0_i32_1 = arith.constant 0 : i32
    return %c0_i32, %c0_i32_0 : i32, i32
  }
  func.func @transform_5(%arg0: i32) -> (i32, i32) {
    %c0_i32 = arith.constant 0 : i32
    %c0_i32_0 = arith.constant 0 : i32
    %c0_i32_1 = arith.constant 0 : i32
    return %c0_i32, %c0_i32_0 : i32, i32
  }
  func.func @transform_6(%arg0: i32) -> (i32, i32) {
    %c0_i32 = arith.constant 0 : i32
    %c0_i32_0 = arith.constant 0 : i32
    %c0_i32_1 = arith.constant 0 : i32
    return %c0_i32, %c0_i32_0 : i32, i32
  }
  func.func @transform_7(%arg0: i32) -> (i32, i32) {
    %c0_i32 = arith.constant 0 : i32
    %c0_i32_0 = arith.constant 0 : i32
    %c0_i32_1 = arith.constant 0 : i32
    return %c0_i32, %c0_i32_0 : i32, i32
  }
  func.func @transform_8(%arg0: i32) -> (i32, i32) {
    %c0_i32 = arith.constant 0 : i32
    %c0_i32_0 = arith.constant 0 : i32
    %c0_i32_1 = arith.constant 0 : i32
    return %c0_i32, %c0_i32_0 : i32, i32
  }
  func.func @transform_9(%arg0: i32) -> (i32, i32) {
    %c0_i32 = arith.constant 0 : i32
    %c0_i32_0 = arith.constant 0 : i32
    return %c0_i32, %arg0 : i32, i32
  }
}

</mosaic_0001>

<llo_original>
// kernel: _forward_impl.1
$region0: #{_forward_impl.1}
  #allocation0 [shape = 'u32[]', space=smem, size = 0x4, offset = 0x4, fixed_abs, tag = 'smem constant byte address 0x4 - core index']
  #allocation1 [shape = 'u32[144,128]{1,0:T(1,128)}', space=vmem, size = 0x12000, scoped, tag = 'internal scratch']
  #allocation2 [shape = 'f32[1,1]{1,0:T(1,128)S(1)}', space=vmem, size = 0x200, scoped, tag = 'scoped memory for _forward_impl.1']
  %s0 = inlined_call_operand.vmem [shape: f32[512,64], index: 0, kind: input, shape index: {}]
  %s1 = inlined_call_operand.vmem [shape: bf16[32,64], index: 1, kind: input, shape index: {}]
  %s2 = inlined_call_operand.vmem [shape: f32[32,1], index: 2, kind: input, shape index: {}]
  %s3 = inlined_call_operand.vmem [shape: bf16[16,32], index: 3, kind: input, shape index: {}]
  %s4 = inlined_call_operand.vmem [shape: f32[16,1], index: 4, kind: input, shape index: {}]
  %s5 = inlined_call_operand.vmem [shape: bf16[4,16], index: 5, kind: input, shape index: {}]
  %s6 = inlined_call_operand.vmem [shape: f32[4,1], index: 6, kind: input, shape index: {}]
  %s7 = inlined_call_operand.vmem [shape: f32[4,1], index: 7, kind: input, shape index: {}]
  %s8 = inlined_call_operand.<no memory space> [shape: f32[1,1], index: 8, kind: input, shape index: {}]
  %s9 = inlined_call_operand.hbm [shape: f32[1,512], index: 9, kind: output, shape index: {}]
  %s10 = sld [smem:[#allocation0]]
  $region69: #{_forward_impl.1} parent=0
    _
  %s12 = ssub.s32 1, %s10
  %s13 = scalar_select 0, %s12, %s10
  %v14 = vstv %s8
  %15 = vst [vmem:[#allocation2] sm:$0x1] %v14
  $region1: #{_forward_impl.1} parent=0
    #allocation3 [shape = 'u8[2048]{0}', space=vmem, size = 0x800, scoped, tag = 'output window, operand 0']
    #allocation4 [shape = 's32[2]{0}', space=sflag, size = 0x8, scoped, tag = 'scoped memory for _forward_impl.1']
    %16 = vsyncpa [#allocation4], 0
    %s17 = scalar_lea.sflag [#allocation4], 1
    %18 = vsyncpa %s17, 0
    loop: start=0, step=1, limit=4
    $region2: #{_forward_impl.1} parent=1 // loop_pre_header
      _
    $region3: #{_forward_impl.1} parent=1 // loop_header
      %s20 = sphi 0, %s24
      %p21 = scmp.ge.s32.totalorder %s20, 4
      %s30 = sphi 0, %s32
      %s33 = sphi 0, %s30
      %s34 = sphi 0, %s33
      %s50 = sphi 0, %s34
      %s54 = sphi 0, %s54
      %s56 = sphi 0, %s54
      %s57 = sphi 0, %s56
      %s71 = sphi 0, %s57
      %s75 = sphi 0, %s75
      %s77 = sphi 0, %s75
      %s78 = sphi 0, %s77
      %s92 = sphi 0, %s78
      %s96 = sphi 0, %s96
      %s98 = sphi 0, %s96
      %s99 = sphi 0, %s98
      %s113 = sphi 0, %s99
      %s117 = sphi 0, %s117
      %s119 = sphi 0, %s117
      %s120 = sphi 0, %s119
      %s134 = sphi 0, %s120
      %s138 = sphi 0, %s138
      %s140 = sphi 0, %s138
      %s141 = sphi 0, %s140
      %s155 = sphi 0, %s141
      %s159 = sphi 0, %s159
      %s161 = sphi 0, %s159
      %s162 = sphi 0, %s161
      %s176 = sphi 0, %s162
      %s180 = sphi 0, %s180
      %s182 = sphi 0, %s180
      %s183 = sphi 0, %s182
      %s197 = sphi 0, %s183
      %s201 = sphi 0, %s201
      %s203 = sphi 0, %s201
      %s204 = sphi 0, %s203
      %s218 = sphi 0, %s204
      %s224 = sphi 0, %s226
      %s227 = sphi 0, %s224
      %s228 = sphi 0, %s227
      %s244 = sphi 0, %s228
    $region4: #{_forward_impl.1} parent=1 // loop_header_branch
      %23 = sbr.rel (%p21) target = $region8
    $region5: #{_forward_impl.1} parent=1 // loop_body
      %s25 = ssub.s32 %s20, 1
      %s26 = ssub.s32 %s20, 2
      %s27 = sadd.s32 %s20, 1
      %s28 = ssub.s32 %s20, %s27
      %p29 = scmp.eq.s32.totalorder %s28, 0
      %s31 = sadd.s32 %s30, 1
      %s32 = scalar_select %p29, %s30, %s31
      %p35 = pneg %p29
      %p36 = scmp.eq.s32.totalorder %s20, 1
      %p37 = por %p35, %p36
      %p38 = scmp.ne.s32.totalorder %s30, %s33
      %p39 = scmp.eq.s32.totalorder %s20, 0
      %p40 = por %p38, %p39
      %p41 = scmp.ne.s32.totalorder %s30, %s33
      %p42 = scmp.eq.s32.totalorder %s25, 1
      %p43 = por %p41, %p42
      %p44 = scmp.ne.s32.totalorder %s33, %s34
      %p45 = scmp.eq.s32.totalorder %s25, 0
      %p46 = por %p44, %p45
      %p47 = scmp.ne.s32.totalorder %s33, %s34
      %p48 = scmp.eq.s32.totalorder %s26, 1
      %p49 = por %p47, %p48
      %p51 = scmp.ne.s32.totalorder %s34, %s50
      %p52 = scmp.eq.s32.totalorder %s26, 0
      %p53 = por %p51, %p52
      %s55 = sadd.s32 %s54, 1
      %p58 = scmp.eq.s32.totalorder %s20, 1
      %p59 = scmp.ne.s32.totalorder %s54, %s56
      %p60 = scmp.eq.s32.totalorder %s20, 0
      %p61 = por %p59, %p60
      %p62 = scmp.ne.s32.totalorder %s54, %s56
      %p63 = scmp.eq.s32.totalorder %s25, 1
      %p64 = por %p62, %p63
      %p65 = scmp.ne.s32.totalorder %s56, %s57
      %p66 = scmp.eq.s32.totalorder %s25, 0
      %p67 = por %p65, %p66
      %p68 = scmp.ne.s32.totalorder %s56, %s57
      %p69 = scmp.eq.s32.totalorder %s26, 1
      %p70 = por %p68, %p69
      %p72 = scmp.ne.s32.totalorder %s57, %s71
      %p73 = scmp.eq.s32.totalorder %s26, 0
      %p74 = por %p72, %p73
      %s76 = sadd.s32 %s75, 1
      %p79 = scmp.eq.s32.totalorder %s20, 1
      %p80 = scmp.ne.s32.totalorder %s75, %s77
      %p81 = scmp.eq.s32.totalorder %s20, 0
      %p82 = por %p80, %p81
      %p83 = scmp.ne.s32.totalorder %s75, %s77
      %p84 = scmp.eq.s32.totalorder %s25, 1
      %p85 = por %p83, %p84
      %p86 = scmp.ne.s32.totalorder %s77, %s78
      %p87 = scmp.eq.s32.totalorder %s25, 0
      %p88 = por %p86, %p87
      %p89 = scmp.ne.s32.totalorder %s77, %s78
      %p90 = scmp.eq.s32.totalorder %s26, 1
      %p91 = por %p89, %p90
      %p93 = scmp.ne.s32.totalorder %s78, %s92
      %p94 = scmp.eq.s32.totalorder %s26, 0
      %p95 = por %p93, %p94
      %s97 = sadd.s32 %s96, 1
      %p100 = scmp.eq.s32.totalorder %s20, 1
      %p101 = scmp.ne.s32.totalorder %s96, %s98
      %p102 = scmp.eq.s32.totalorder %s20, 0
      %p103 = por %p101, %p102
      %p104 = scmp.ne.s32.totalorder %s96, %s98
      %p105 = scmp.eq.s32.totalorder %s25, 1
      %p106 = por %p104, %p105
      %p107 = scmp.ne.s32.totalorder %s98, %s99
      %p108 = scmp.eq.s32.totalorder %s25, 0
      %p109 = por %p107, %p108
      %p110 = scmp.ne.s32.totalorder %s98, %s99
      %p111 = scmp.eq.s32.totalorder %s26, 1
      %p112 = por %p110, %p111
      %p114 = scmp.ne.s32.totalorder %s99, %s113
      %p115 = scmp.eq.s32.totalorder %s26, 0
      %p116 = por %p114, %p115
      %s118 = sadd.s32 %s117, 1
      %p121 = scmp.eq.s32.totalorder %s20, 1
      %p122 = scmp.ne.s32.totalorder %s117, %s119
      %p123 = scmp.eq.s32.totalorder %s20, 0
      %p124 = por %p122, %p123
      %p125 = scmp.ne.s32.totalorder %s117, %s119
      %p126 = scmp.eq.s32.totalorder %s25, 1
      %p127 = por %p125, %p126
      %p128 = scmp.ne.s32.totalorder %s119, %s120
      %p129 = scmp.eq.s32.totalorder %s25, 0
      %p130 = por %p128, %p129
      %p131 = scmp.ne.s32.totalorder %s119, %s120
      %p132 = scmp.eq.s32.totalorder %s26, 1
      %p133 = por %p131, %p132
      %p135 = scmp.ne.s32.totalorder %s120, %s134
      %p136 = scmp.eq.s32.totalorder %s26, 0
      %p137 = por %p135, %p136
      %s139 = sadd.s32 %s138, 1
      %p142 = scmp.eq.s32.totalorder %s20, 1
      %p143 = scmp.ne.s32.totalorder %s138, %s140
      %p144 = scmp.eq.s32.totalorder %s20, 0
      %p145 = por %p143, %p144
      %p146 = scmp.ne.s32.totalorder %s138, %s140
      %p147 = scmp.eq.s32.totalorder %s25, 1
      %p148 = por %p146, %p147
      %p149 = scmp.ne.s32.totalorder %s140, %s141
      %p150 = scmp.eq.s32.totalorder %s25, 0
      %p151 = por %p149, %p150
      %p152 = scmp.ne.s32.totalorder %s140, %s141
      %p153 = scmp.eq.s32.totalorder %s26, 1
      %p154 = por %p152, %p153
      %p156 = scmp.ne.s32.totalorder %s141, %s155
      %p157 = scmp.eq.s32.totalorder %s26, 0
      %p158 = por %p156, %p157
      %s160 = sadd.s32 %s159, 1
      %p163 = scmp.eq.s32.totalorder %s20, 1
      %p164 = scmp.ne.s32.totalorder %s159, %s161
      %p165 = scmp.eq.s32.totalorder %s20, 0
      %p166 = por %p164, %p165
      %p167 = scmp.ne.s32.totalorder %s159, %s161
      %p168 = scmp.eq.s32.totalorder %s25, 1
      %p169 = por %p167, %p168
      %p170 = scmp.ne.s32.totalorder %s161, %s162
      %p171 = scmp.eq.s32.totalorder %s25, 0
      %p172 = por %p170, %p171
      %p173 = scmp.ne.s32.totalorder %s161, %s162
      %p174 = scmp.eq.s32.totalorder %s26, 1
      %p175 = por %p173, %p174
      %p177 = scmp.ne.s32.totalorder %s162, %s176
      %p178 = scmp.eq.s32.totalorder %s26, 0
      %p179 = por %p177, %p178
      %s181 = sadd.s32 %s180, 1
      %p184 = scmp.eq.s32.totalorder %s20, 1
      %p185 = scmp.ne.s32.totalorder %s180, %s182
      %p186 = scmp.eq.s32.totalorder %s20, 0
      %p187 = por %p185, %p186
      %p188 = scmp.ne.s32.totalorder %s180, %s182
      %p189 = scmp.eq.s32.totalorder %s25, 1
      %p190 = por %p188, %p189
      %p191 = scmp.ne.s32.totalorder %s182, %s183
      %p192 = scmp.eq.s32.totalorder %s25, 0
      %p193 = por %p191, %p192
      %p194 = scmp.ne.s32.totalorder %s182, %s183
      %p195 = scmp.eq.s32.totalorder %s26, 1
      %p196 = por %p194, %p195
      %p198 = scmp.ne.s32.totalorder %s183, %s197
      %p199 = scmp.eq.s32.totalorder %s26, 0
      %p200 = por %p198, %p199
      %s202 = sadd.s32 %s201, 1
      %p205 = scmp.eq.s32.totalorder %s20, 1
      %p206 = scmp.ne.s32.totalorder %s201, %s203
      %p207 = scmp.eq.s32.totalorder %s20, 0
      %p208 = por %p206, %p207
      %p209 = scmp.ne.s32.totalorder %s201, %s203
      %p210 = scmp.eq.s32.totalorder %s25, 1
      %p211 = por %p209, %p210
      %p212 = scmp.ne.s32.totalorder %s203, %s204
      %p213 = scmp.eq.s32.totalorder %s25, 0
      %p214 = por %p212, %p213
      %p215 = scmp.ne.s32.totalorder %s203, %s204
      %p216 = scmp.eq.s32.totalorder %s26, 1
      %p217 = por %p215, %p216
      %p219 = scmp.ne.s32.totalorder %s204, %s218
      %p220 = scmp.eq.s32.totalorder %s26, 0
      %p221 = por %p219, %p220
      %s222 = ssub.s32 %s20, %s27
      %p223 = scmp.eq.s32.totalorder %s222, 0
      %s225 = sadd.s32 %s224, 1
      %s226 = scalar_select %p223, %s224, %s225
      %p229 = pneg %p223
      %p230 = scmp.eq.s32.totalorder %s20, 1
      %p231 = por %p229, %p230
      %p232 = scmp.ne.s32.totalorder %s224, %s227
      %p233 = scmp.eq.s32.totalorder %s20, 0
      %p234 = por %p232, %p233
      %p235 = scmp.ne.s32.totalorder %s224, %s227
      %p236 = scmp.eq.s32.totalorder %s25, 1
      %p237 = por %p235, %p236
      %p238 = scmp.ne.s32.totalorder %s227, %s228
      %p239 = scmp.eq.s32.totalorder %s25, 0
      %p240 = por %p238, %p239
      %p241 = scmp.ne.s32.totalorder %s227, %s228
      %p242 = scmp.eq.s32.totalorder %s26, 1
      %p243 = por %p241, %p242
      %p245 = scmp.ne.s32.totalorder %s228, %s244
      %p246 = scmp.eq.s32.totalorder %s26, 0
      %p247 = por %p245, %p246
      %p248 = scmp.le.s32.totalorder 1, %s20
      %p249 = scmp.lt.s32.totalorder %s20, 3
      %p250 = pnand %p248, %p249
      %p251 = pneg %p250
      // Predicated region
      $region9: #{_forward_impl.1} parent=5 // pred_check
        _
      $region10: #{_forward_impl.1} parent=5 // pred_check_branch
        %253 = sbr.rel (%p250) target = $region12
      $region11: #{_forward_impl.1} parent=5 // pred_region
        %s254 = ssub.s32 %s20, 1
        // Predicated region
        $region13: #{_forward_impl.1} parent=11 // pred_check
          %p255 = pneg %p67
        $region14: #{_forward_impl.1} parent=11 // pred_check_branch
          %257 = sbr.rel (%p255) target = $region16
        $region15: #{_forward_impl.1} parent=11 // pred_region
          _
        $region16: #{_forward_impl.1} parent=11 // pred_fallthru
          _
        // Predicated region
        $region17: #{_forward_impl.1} parent=11 // pred_check
          %p258 = pneg %p88
        $region18: #{_forward_impl.1} parent=11 // pred_check_branch
          %260 = sbr.rel (%p258) target = $region20
        $region19: #{_forward_impl.1} parent=11 // pred_region
          _
        $region20: #{_forward_impl.1} parent=11 // pred_fallthru
          _
        // Predicated region
        $region21: #{_forward_impl.1} parent=11 // pred_check
          %p261 = pneg %p109
        $region22: #{_forward_impl.1} parent=11 // pred_check_branch
          %263 = sbr.rel (%p261) target = $region24
        $region23: #{_forward_impl.1} parent=11 // pred_region
          _
        $region24: #{_forward_impl.1} parent=11 // pred_fallthru
          _
        // Predicated region
        $region25: #{_forward_impl.1} parent=11 // pred_check
          %p264 = pneg %p130
        $region26: #{_forward_impl.1} parent=11 // pred_check_branch
          %266 = sbr.rel (%p264) target = $region28
        $region27: #{_forward_impl.1} parent=11 // pred_region
          _
        $region28: #{_forward_impl.1} parent=11 // pred_fallthru
          _
        // Predicated region
        $region29: #{_forward_impl.1} parent=11 // pred_check
          %p267 = pneg %p151
        $region30: #{_forward_impl.1} parent=11 // pred_check_branch
          %269 = sbr.rel (%p267) target = $region32
        $region31: #{_forward_impl.1} parent=11 // pred_region
          _
        $region32: #{_forward_impl.1} parent=11 // pred_fallthru
          _
        // Predicated region
        $region33: #{_forward_impl.1} parent=11 // pred_check
          %p270 = pneg %p172
        $region34: #{_forward_impl.1} parent=11 // pred_check_branch
          %272 = sbr.rel (%p270) target = $region36
        $region35: #{_forward_impl.1} parent=11 // pred_region
          _
        $region36: #{_forward_impl.1} parent=11 // pred_fallthru
          _
        // Predicated region
        $region37: #{_forward_impl.1} parent=11 // pred_check
          %p273 = pneg %p193
        $region38: #{_forward_impl.1} parent=11 // pred_check_branch
          %275 = sbr.rel (%p273) target = $region40
        $region39: #{_forward_impl.1} parent=11 // pred_region
          _
        $region40: #{_forward_impl.1} parent=11 // pred_fallthru
          _
        // Predicated region
        $region41: #{_forward_impl.1} parent=11 // pred_check
          %p276 = pneg %p214
        $region42: #{_forward_impl.1} parent=11 // pred_check_branch
          %278 = sbr.rel (%p276) target = $region44
        $region43: #{_forward_impl.1} parent=11 // pred_region
          _
        $region44: #{_forward_impl.1} parent=11 // pred_fallthru
          _
      $region12: #{_forward_impl.1} parent=5 // pred_fallthru
        _
      %p279 = scmp.lt.s32.totalorder %s20, 2
      // Predicated region
      $region45: #{_forward_impl.1} parent=5 // pred_check
        %p280 = pneg %p279
      $region46: #{_forward_impl.1} parent=5 // pred_check_branch
        %282 = sbr.rel (%p280) target = $region48
      $region47: #{_forward_impl.1} parent=5 // pred_region
        // Predicated region
        $region49: #{_forward_impl.1} parent=47 // pred_check
          %p283 = pneg %p40
        $region50: #{_forward_impl.1} parent=47 // pred_check_branch
          %285 = sbr.rel (%p283) target = $region52
        $region51: #{_forward_impl.1} parent=47 // pred_region
          %s286 = smul.u32 32, %s20
          %p287 = scmp.lt.s32.totalorder %s286, 63
          %s288 = scalar_select %p287, %s286, 63
          %s289 = smul.addr %s288, 8
          %s290 = scalar_lea.vmem %s0, %s289
          %s291 = smul.u32 32, %s20
        $region52: #{_forward_impl.1} parent=47 // pred_fallthru
          _
      $region48: #{_forward_impl.1} parent=5 // pred_fallthru
        _
      %p292 = scmp.le.s32.totalorder 1, %s20
      %p293 = scmp.lt.s32.totalorder %s20, 3
      %p294 = pnand %p292, %p293
      %p295 = pneg %p294
      // Predicated region
      $region53: #{_forward_impl.1} parent=5 // pred_check
        _
      $region54: #{_forward_impl.1} parent=5 // pred_check_branch
        %297 = sbr.rel (%p294) target = $region56
      $region55: #{_forward_impl.1} parent=5 // pred_region
        %s298 = ssub.s32 %s20, 1
        %s299 = smul.u32 32, %s25
        %p300 = scmp.lt.s32.totalorder %s299, 63
        %s301 = scalar_select %p300, %s299, 63
        %s302 = smul.addr %s301, 8
        %s303 = scalar_lea.vmem %s0, %s302
        %p304 = pneg %p46
        %p305 = pneg %p43
        %p306 = pneg %p67
        %p307 = pneg %p64
        %p308 = pneg %p88
        %p309 = pneg %p85
        %p310 = pneg %p109
        %p311 = pneg %p106
        %p312 = pneg %p130
        %p313 = pneg %p127
        %p314 = pneg %p151
        %p315 = pneg %p148
        %p316 = pneg %p172
        %p317 = pneg %p169
        %p318 = pneg %p193
        %p319 = pneg %p190
        %p320 = pneg %p214
        %p321 = pneg %p211
        %p322 = pneg %p240
        %p323 = pneg %p237
        %s324 = sand.u32 %s227, 1
        %s325 = scalar_lea.sflag [#allocation4], %s324
        %s326 = sand.u32 %s227, 1
        %s327 = smul.addr %s326, 2
        %s328 = scalar_lea.vmem [#allocation3], %s327
        %s329 = smul.u32 32, %s25
        %p330 = scmp.lt.s32.totalorder %s329, 63
        %s331 = scalar_select %p330, %s329, 63
        %s332 = smul.addr %s331, 8
        %s333 = scalar_lea.vmem %s0, %s332
        %s334 = smul.u32 32, %s25
        %s335 = smul.u32 2, %s25
        %v337 = vld [vmem:[%s333] sm:$0xff]
        %v338 = vld [vmem:[%s333 + $0x8] sm:$0xff]
        %v339 = vld [vmem:[%s333 + $0x10] sm:$0xff]
        %v340 = vld [vmem:[%s333 + $0x18] sm:$0xff]
        %v341 = vld [vmem:[%s333 + $0x20] sm:$0xff]
        %v342 = vld [vmem:[%s333 + $0x28] sm:$0xff]
        %v343 = vld [vmem:[%s333 + $0x30] sm:$0xff]
        %v344 = vld [vmem:[%s333 + $0x38] sm:$0xff]
        %v345 = vld [vmem:[%s333 + $0x40] sm:$0xff]
        %v346 = vld [vmem:[%s333 + $0x48] sm:$0xff]
        %v347 = vld [vmem:[%s333 + $0x50] sm:$0xff]
        %v348 = vld [vmem:[%s333 + $0x58] sm:$0xff]
        %v349 = vld [vmem:[%s333 + $0x60] sm:$0xff]
        %v350 = vld [vmem:[%s333 + $0x68] sm:$0xff]
        %v351 = vld [vmem:[%s333 + $0x70] sm:$0xff]
        %v352 = vld [vmem:[%s333 + $0x78] sm:$0xff]
        %v353 = vld [vmem:[%s333 + $0x80] sm:$0xff]
        %v354 = vld [vmem:[%s333 + $0x88] sm:$0xff]
        %v355 = vld [vmem:[%s333 + $0x90] sm:$0xff]
        %v356 = vld [vmem:[%s333 + $0x98] sm:$0xff]
        %v357 = vld [vmem:[%s333 + $0xa0] sm:$0xff]
        %v358 = vld [vmem:[%s333 + $0xa8] sm:$0xff]
        %v359 = vld [vmem:[%s333 + $0xb0] sm:$0xff]
        %v360 = vld [vmem:[%s333 + $0xb8] sm:$0xff]
        %v361 = vld [vmem:[%s333 + $0xc0] sm:$0xff]
        %v362 = vld [vmem:[%s333 + $0xc8] sm:$0xff]
        %v363 = vld [vmem:[%s333 + $0xd0] sm:$0xff]
        %v364 = vld [vmem:[%s333 + $0xd8] sm:$0xff]
        %v365 = vld [vmem:[%s333 + $0xe0] sm:$0xff]
        %v366 = vld [vmem:[%s333 + $0xe8] sm:$0xff]
        %v367 = vld [vmem:[%s333 + $0xf0] sm:$0xff]
        %v368 = vld [vmem:[%s333 + $0xf8] sm:$0xff]
        %v369 = vpack.c.bf16 %v338, %v337
        %v370 = vpack.c.bf16 %v340, %v339
        %v371 = vpack.c.bf16 %v342, %v341
        %v372 = vpack.c.bf16 %v344, %v343
        %v373 = vpack.c.bf16 %v346, %v345
        %v374 = vpack.c.bf16 %v348, %v347
        %v375 = vpack.c.bf16 %v350, %v349
        %v376 = vpack.c.bf16 %v352, %v351
        %v377 = vpack.c.bf16 %v354, %v353
        %v378 = vpack.c.bf16 %v356, %v355
        %v379 = vpack.c.bf16 %v358, %v357
        %v380 = vpack.c.bf16 %v360, %v359
        %v381 = vpack.c.bf16 %v362, %v361
        %v382 = vpack.c.bf16 %v364, %v363
        %v383 = vpack.c.bf16 %v366, %v365
        %v384 = vpack.c.bf16 %v368, %v367
        %v385 = vld [vmem:[%s1] sm:$0xf]
        %v386 = vld [vmem:[%s1 + $0x4] sm:$0xf]
        %v387 = vld [vmem:[%s1 + $0x8] sm:$0xf]
        %v388 = vld [vmem:[%s1 + $0xc] sm:$0xf]
        %v389 = vld [vmem:[%s2] sm:$0xff]
        %v390 = vld [vmem:[%s2 + $0x8] sm:$0xff]
        %v391 = vld [vmem:[%s2 + $0x10] sm:$0xff]
        %v392 = vld [vmem:[%s2 + $0x18] sm:$0xff]
        %394 = vset.pattern.permute.xlu0 0
        %395 = vperm.xlu0 %394, %v389
        %v396 = vpop.permute.xlu0 %395
        %399 = vset.pattern.permute.xlu0 0
        %400 = vperm.xlu0 %399, %v390
        %v401 = vpop.permute.xlu0 %400
        %404 = vset.pattern.permute.xlu0 0
        %405 = vperm.xlu0 %404, %v391
        %v406 = vpop.permute.xlu0 %405
        %409 = vset.pattern.permute.xlu0 0
        %410 = vperm.xlu0 %409, %v392
        %v411 = vpop.permute.xlu0 %410
        %v417 = vunpack.c.l.b16 %v385
        %v418 = vunpack.c.l.b16 %v386
        %v419 = vunpack.c.l.b16 %v387
        %v420 = vunpack.c.l.b16 %v388
        %v421 = vpack.c.b16 %v418, %v417
        %v422 = vpack.c.b16 %v420, %v419
        %vm423 = vcmask 523264
        %v425 = vsel %vm423, %v421, 0
        %v428 = vsel %vm423, %v422, 0
        %v431 = vsel %vm423, %v369, 0
        %v434 = vsel %vm423, %v370, 0
        %v437 = vsel %vm423, %v371, 0
        %v440 = vsel %vm423, %v372, 0
        %v443 = vsel %vm423, %v373, 0
        %v446 = vsel %vm423, %v374, 0
        %v449 = vsel %vm423, %v375, 0
        %v452 = vsel %vm423, %v376, 0
        %v455 = vsel %vm423, %v377, 0
        %v458 = vsel %vm423, %v378, 0
        %v461 = vsel %vm423, %v379, 0
        %v464 = vsel %vm423, %v380, 0
        %v467 = vsel %vm423, %v381, 0
        %v470 = vsel %vm423, %v382, 0
        %v473 = vsel %vm423, %v383, 0
        %v476 = vsel %vm423, %v384, 0
        %478 = vmatprep.subr.bf16.mxu0 0
        %479 = vmatpush1.bf16.xpose.msra.mxu0 %v452
        %480 = vmatprep.subr.bf16.mxu0 0
        %481 = vmatpush1.bf16.xpose.msra.mxu0 %v449
        %482 = vmatprep.subr.bf16.mxu0 0
        %483 = vmatpush1.bf16.xpose.msra.mxu0 %v446
        %484 = vmatprep.subr.bf16.mxu0 0
        %485 = vmatpush1.bf16.xpose.msra.mxu0 %v443
        %486 = vmatprep.subr.bf16.mxu0 0
        %487 = vmatpush1.bf16.xpose.msra.mxu0 %v440
        %488 = vmatprep.subr.bf16.mxu0 0
        %489 = vmatpush1.bf16.xpose.msra.mxu0 %v437
        %490 = vmatprep.subr.bf16.mxu0 0
        %491 = vmatpush1.bf16.xpose.msra.mxu0 %v434
        %492 = vmatprep.subr.bf16.mxu0 0
        %493 = vmatpush1.bf16.xpose.msra.mxu0 %v431
        %494 = vmatprep.subr.bf16.mxu0 0
        %495 = vmatpush2.bf16.xpose.msra.mxu0 %v476
        %496 = vmatprep.subr.bf16.mxu0 0
        %497 = vmatpush2.bf16.xpose.msra.mxu0 %v473
        %498 = vmatprep.subr.bf16.mxu0 0
        %499 = vmatpush2.bf16.xpose.msra.mxu0 %v470
        %500 = vmatprep.subr.bf16.mxu0 0
        %501 = vmatpush2.bf16.xpose.msra.mxu0 %v467
        %502 = vmatprep.subr.bf16.mxu0 0
        %503 = vmatpush2.bf16.xpose.msra.mxu0 %v464
        %504 = vmatprep.subr.bf16.mxu0 0
        %505 = vmatpush2.bf16.xpose.msra.mxu0 %v461
        %506 = vmatprep.subr.bf16.mxu0 0
        %507 = vmatpush2.bf16.xpose.msra.mxu0 %v458
        %508 = vmatprep.subr.bf16.mxu0 0
        %509 = vmatpush2.bf16.xpose.msra.mxu0 %v455
        %510 = vmatprep.mubr.bf16.mxu0 0
        %511 = vmatmul.mubr.bf16.gmra.mxu0 %v425
        %v512 = vpop.f32.mrf.mxu0
        %v513 = vadd.f32 %v396, %v512
        %v514 = vpop.f32.mrf.mxu0
        %v515 = vadd.f32 %v396, %v514
        %v516 = vpop.f32.mrf.mxu0
        %v517 = vadd.f32 %v401, %v516
        %v518 = vpop.f32.mrf.mxu0
        %v519 = vadd.f32 %v401, %v518
        %520 = vmatprep.mubr.bf16.mxu0 0
        %521 = vmatmul.mubr.bf16.gmra.mxu0 %v428
        %v522 = vpop.f32.mrf.mxu0
        %v523 = vadd.f32 %v406, %v522
        %v524 = vpop.f32.mrf.mxu0
        %v525 = vadd.f32 %v406, %v524
        %v526 = vpop.f32.mrf.mxu0
        %v527 = vadd.f32 %v411, %v526
        %v528 = vpop.f32.mrf.mxu0
        %v529 = vadd.f32 %v411, %v528
        %530 = vdwg.mxu0
        %v531 = vmax.f32 %v513, -30.0
        %v532 = vmax.f32 %v515, -30.0
        %v533 = vmax.f32 %v517, -30.0
        %v534 = vmax.f32 %v519, -30.0
        %v535 = vmax.f32 %v523, -30.0
        %v536 = vmax.f32 %v525, -30.0
        %v537 = vmax.f32 %v527, -30.0
        %v538 = vmax.f32 %v529, -30.0
        %v539 = vmin.f32 %v531, 30.0
        %v540 = vmin.f32 %v532, 30.0
        %v541 = vmin.f32 %v533, 30.0
        %v542 = vmin.f32 %v534, 30.0
        %v543 = vmin.f32 %v535, 30.0
        %v544 = vmin.f32 %v536, 30.0
        %v545 = vmin.f32 %v537, 30.0
        %v546 = vmin.f32 %v538, 30.0
        %v547 = vsub.f32 0.0, %v539
        %v548 = vsub.f32 0.0, %v540
        %v549 = vsub.f32 0.0, %v541
        %v550 = vsub.f32 0.0, %v542
        %v551 = vsub.f32 0.0, %v543
        %v552 = vsub.f32 0.0, %v544
        %v553 = vsub.f32 0.0, %v545
        %v554 = vsub.f32 0.0, %v546
        %v555 = vmul.f32 %v547, 1.442695
        %v556 = vpow.pop %v555
        %v557 = vmul.f32 %v548, 1.442695
        %v558 = vpow.pop %v557
        %v559 = vmul.f32 %v549, 1.442695
        %v560 = vpow.pop %v559
        %v561 = vmul.f32 %v550, 1.442695
        %v562 = vpow.pop %v561
        %v563 = vmul.f32 %v551, 1.442695
        %v564 = vpow.pop %v563
        %v565 = vmul.f32 %v552, 1.442695
        %v566 = vpow.pop %v565
        %v567 = vmul.f32 %v553, 1.442695
        %v568 = vpow.pop %v567
        %v569 = vmul.f32 %v554, 1.442695
        %v570 = vpow.pop %v569
        %v571 = vadd.f32 %v556, 1.0
        %v572 = vadd.f32 %v558, 1.0
        %v573 = vadd.f32 %v560, 1.0
        %v574 = vadd.f32 %v562, 1.0
        %v575 = vadd.f32 %v564, 1.0
        %v576 = vadd.f32 %v566, 1.0
        %v577 = vadd.f32 %v568, 1.0
        %v578 = vadd.f32 %v570, 1.0
        %v579 = vrcp.pop %v571
        %v580 = vrcp.pop %v572
        %v581 = vrcp.pop %v573
        %v582 = vrcp.pop %v574
        %v583 = vrcp.pop %v575
        %v584 = vrcp.pop %v576
        %v585 = vrcp.pop %v577
        %v586 = vrcp.pop %v578
        %v587 = vld [vmem:[%s3] sm:$0xf]
        %v588 = vld [vmem:[%s3 + $0x4] sm:$0xf]
        %v589 = vpack.c.bf16 %v581, %v579
        %v590 = vpack.c.bf16 %v582, %v580
        %v591 = vpack.c.bf16 %v585, %v583
        %v592 = vpack.c.bf16 %v586, %v584
        %v593 = vld [vmem:[%s4] sm:$0xff]
        %v594 = vld [vmem:[%s4 + $0x8] sm:$0xff]
        %596 = vset.pattern.permute.xlu0 0
        %597 = vperm.xlu0 %596, %v593
        %v598 = vpop.permute.xlu0 %597
        %601 = vset.pattern.permute.xlu0 0
        %602 = vperm.xlu0 %601, %v594
        %v603 = vpop.permute.xlu0 %602
        %v607 = vunpack.c.l.b16 %v587
        %v608 = vunpack.c.l.b16 %v588
        %v609 = vpack.c.b16 %v608, %v607
        %vm610 = vcmask 261120
        %v612 = vsel %vm610, %v609, 0
        %614 = vmatprep.subr.bf16.mxu0 0
        %615 = vmatpush1.bf16.msra.mxu0 0
        %616 = vmatprep.subr.bf16.mxu0 0
        %617 = vmatpush1.bf16.msra.mxu0 0
        %618 = vmatprep.subr.bf16.mxu0 0
        %619 = vmatpush1.bf16.msra.mxu0 0
        %620 = vmatprep.subr.bf16.mxu0 0
        %621 = vmatpush1.bf16.msra.mxu0 0
        %622 = vmatprep.subr.bf16.mxu0 0
        %623 = vmatpush1.bf16.msra.mxu0 0
        %624 = vmatprep.subr.bf16.mxu0 0
        %625 = vmatpush1.bf16.msra.mxu0 0
        %626 = vmatprep.subr.bf16.mxu0 %v592
        %627 = vmatpush1.bf16.msra.mxu0 %v591
        %628 = vmatprep.subr.bf16.mxu0 %v590
        %629 = vmatpush1.bf16.msra.mxu0 %v589
        %630 = vmatprep.subr.bf16.mxu0 0
        %631 = vmatpush2.bf16.msra.mxu0 0
        %632 = vmatprep.subr.bf16.mxu0 0
        %633 = vmatpush2.bf16.msra.mxu0 0
        %634 = vmatprep.subr.bf16.mxu0 0
        %635 = vmatpush2.bf16.msra.mxu0 0
        %636 = vmatprep.subr.bf16.mxu0 0
        %637 = vmatpush2.bf16.msra.mxu0 0
        %638 = vmatprep.subr.bf16.mxu0 0
        %639 = vmatpush2.bf16.msra.mxu0 0
        %640 = vmatprep.subr.bf16.mxu0 0
        %641 = vmatpush2.bf16.msra.mxu0 0
        %642 = vmatprep.subr.bf16.mxu0 0
        %643 = vmatpush2.bf16.msra.mxu0 0
        %644 = vmatprep.subr.bf16.mxu0 0
        %645 = vmatpush2.bf16.msra.mxu0 0
        %646 = vmatprep.mubr.bf16.mxu0 0
        %647 = vmatmul.mubr.bf16.gmra.mxu0 %v612
        %v648 = vpop.f32.mrf.mxu0
        %v649 = vadd.f32 %v598, %v648
        %v650 = vpop.f32.mrf.mxu0
        %v651 = vadd.f32 %v598, %v650
        %v652 = vpop.f32.mrf.mxu0
        %v653 = vadd.f32 %v603, %v652
        %v654 = vpop.f32.mrf.mxu0
        %v655 = vadd.f32 %v603, %v654
        %656 = vdwg.mxu0
        %v657 = vmax.f32 %v649, -30.0
        %v658 = vmax.f32 %v651, -30.0
        %v659 = vmax.f32 %v653, -30.0
        %v660 = vmax.f32 %v655, -30.0
        %v661 = vmin.f32 %v657, 30.0
        %v662 = vmin.f32 %v658, 30.0
        %v663 = vmin.f32 %v659, 30.0
        %v664 = vmin.f32 %v660, 30.0
        %v665 = vsub.f32 0.0, %v661
        %v666 = vsub.f32 0.0, %v662
        %v667 = vsub.f32 0.0, %v663
        %v668 = vsub.f32 0.0, %v664
        %v669 = vmul.f32 %v665, 1.442695
        %v670 = vpow.pop %v669
        %v671 = vmul.f32 %v666, 1.442695
        %v672 = vpow.pop %v671
        %v673 = vmul.f32 %v667, 1.442695
        %v674 = vpow.pop %v673
        %v675 = vmul.f32 %v668, 1.442695
        %v676 = vpow.pop %v675
        %v677 = vadd.f32 %v670, 1.0
        %v678 = vadd.f32 %v672, 1.0
        %v679 = vadd.f32 %v674, 1.0
        %v680 = vadd.f32 %v676, 1.0
        %v681 = vrcp.pop %v677
        %v682 = vrcp.pop %v678
        %v683 = vrcp.pop %v679
        %v684 = vrcp.pop %v680
        %v685 = vld [vmem:[%s5] sm:$0x3]
        %v686 = vpack.c.bf16 %v683, %v681
        %v687 = vpack.c.bf16 %v684, %v682
        %v688 = vld [vmem:[%s6] sm:$0xf]
        %690 = vset.pattern.permute.xlu0 0
        %691 = vperm.xlu0 %690, %v688
        %v692 = vpop.permute.xlu0 %691
        %vm694 = vcmask 130048
        %v696 = vsel %vm694, %v685, 0
        %698 = vmatprep.subr.bf16.mxu0 0
        %699 = vmatpush1.bf16.msra.mxu0 0
        %700 = vmatprep.subr.bf16.mxu0 0
        %701 = vmatpush1.bf16.msra.mxu0 0
        %702 = vmatprep.subr.bf16.mxu0 0
        %703 = vmatpush1.bf16.msra.mxu0 0
        %704 = vmatprep.subr.bf16.mxu0 0
        %705 = vmatpush1.bf16.msra.mxu0 0
        %706 = vmatprep.subr.bf16.mxu0 0
        %707 = vmatpush1.bf16.msra.mxu0 0
        %708 = vmatprep.subr.bf16.mxu0 0
        %709 = vmatpush1.bf16.msra.mxu0 0
        %710 = vmatprep.subr.bf16.mxu0 0
        %711 = vmatpush1.bf16.msra.mxu0 0
        %712 = vmatprep.subr.bf16.mxu0 %v687
        %713 = vmatpush1.bf16.msra.mxu0 %v686
        %714 = vmatprep.subr.bf16.mxu0 0
        %715 = vmatpush2.bf16.msra.mxu0 0
        %716 = vmatprep.subr.bf16.mxu0 0
        %717 = vmatpush2.bf16.msra.mxu0 0
        %718 = vmatprep.subr.bf16.mxu0 0
        %719 = vmatpush2.bf16.msra.mxu0 0
        %720 = vmatprep.subr.bf16.mxu0 0
        %721 = vmatpush2.bf16.msra.mxu0 0
        %722 = vmatprep.subr.bf16.mxu0 0
        %723 = vmatpush2.bf16.msra.mxu0 0
        %724 = vmatprep.subr.bf16.mxu0 0
        %725 = vmatpush2.bf16.msra.mxu0 0
        %726 = vmatprep.subr.bf16.mxu0 0
        %727 = vmatpush2.bf16.msra.mxu0 0
        %728 = vmatprep.subr.bf16.mxu0 0
        %729 = vmatpush2.bf16.msra.mxu0 0
        %730 = vmatprep.mubr.bf16.mxu0 0
        %731 = vmatmul.mubr.bf16.gmra.mxu0 %v696
        %v732 = vpop.f32.mrf.mxu0
        %v733 = vadd.f32 %v692, %v732
        %v734 = vpop.f32.mrf.mxu0
        %v735 = vadd.f32 %v692, %v734
        %v736 = vpop.f32.mrf.mxu0
        %v737 = vpop.f32.mrf.mxu0
        %738 = vdwg.mxu0
        %v739 = vmax.f32 %v733, -30.0
        %v740 = vmax.f32 %v735, -30.0
        %v741 = vmin.f32 %v739, 30.0
        %v742 = vmin.f32 %v740, 30.0
        %v743 = vsub.f32 0.0, %v741
        %v744 = vsub.f32 0.0, %v742
        %v745 = vmul.f32 %v743, 1.442695
        %v746 = vpow.pop %v745
        %v747 = vmul.f32 %v744, 1.442695
        %v748 = vpow.pop %v747
        %v749 = vadd.f32 %v746, 1.0
        %v750 = vadd.f32 %v748, 1.0
        %v751 = vrcp.pop %v749
        %v752 = vrcp.pop %v750
        %v753 = vld [vmem:[%s7] sm:$0xf]
        %755 = vset.pattern.permute.xlu0 0
        %756 = vperm.xlu0 %755, %v753
        %v757 = vpop.permute.xlu0 %756
        %v759 = vmul.f32 %v757, %v751
        %v760 = vmul.f32 %v757, %v752
        %vm761 = vcmask 1043456
        %v762 = vsel %vm761, %v759, 0.0
        %v763 = vrot.slane %v762, 4
        %v764 = vadd.f32 %v762, %v763
        %v765 = vrot.slane %v764, 2
        %v766 = vadd.f32 %v764, %v765
        %v767 = vrot.slane %v766, 1
        %v768 = vadd.f32 %v766, %v767
        %v769 = vsel %vm761, %v760, 0.0
        %v770 = vrot.slane %v769, 4
        %v771 = vadd.f32 %v769, %v770
        %v772 = vrot.slane %v771, 2
        %v773 = vadd.f32 %v771, %v772
        %v774 = vrot.slane %v773, 1
        %v775 = vadd.f32 %v773, %v774
        %v776 = vld [vmem:[#allocation2] sm:$0x1]
        %778 = vset.pattern.permute.xlu0 0
        %779 = vperm.xlu0 %778, %v776
        %v780 = vpop.permute.xlu0 %779
        %v782 = vlaneseq
        %v783 = vshrl.u32 %v782, 7
        %v784 = vsub.s32 0, %v783
        %v785 = vrot.slane %v780, %v784
        %v786 = vadd.f32 %v768, %v785
        %v787 = vadd.f32 %v775, %v785
        %v788 = vmax.f32 %v786, -30.0
        %v789 = vmax.f32 %v787, -30.0
        %v790 = vmin.f32 %v788, 30.0
        %v791 = vmin.f32 %v789, 30.0
        %v792 = vsub.f32 0.0, %v790
        %v793 = vsub.f32 0.0, %v791
        %v794 = vmul.f32 %v792, 1.442695
        %v795 = vpow.pop %v794
        %v796 = vmul.f32 %v793, 1.442695
        %v797 = vpow.pop %v796
        %v798 = vadd.f32 %v795, 1.0
        %v799 = vadd.f32 %v797, 1.0
        %v800 = vrcp.pop %v798
        %v801 = vrcp.pop %v799
        %v804 = vcombine.low %v800, %v801
        %v806 = vunpack.c.l.s4 1966171168
        %v807 = vunpack.c.0.s8 %v806
        %v808 = vlaneseq
        %v809 = vshrl.u32 %v808, 7
        %v810 = vsub.s32 %v807, %v809
        %v811 = vrot.slane %v804, %v810
        %v813 = vunpack.c.l.s4 1966171168
        %v814 = vunpack.c.0.s8 %v813
        %v815 = vlaneseq
        %v816 = vshrl.u32 %v815, 7
        %v817 = vsub.s32 %v814, %v816
        %v818 = vrot.slane %v811, %v817
        %v820 = vlaneseq
        %vm821 = vcmp.ge.s32.totalorder %v820, 0
        %vm822 = vcmp.lt.s32.totalorder %v820, 256
        %vm823 = vmand %vm821, %vm822
        %824 = vst.msk [vmem:[%s328] sm:$0x3] %vm823, %v818
        %s825 = sand.u32 %s227, 1
        %s826 = scalar_lea.sflag [#allocation4], %s825
        %s827 = sand.u32 %s227, 1
        %s828 = smul.addr %s827, 2
        %s829 = scalar_lea.vmem [#allocation3], %s828
        // Predicated region
        $region57: #{_forward_impl.1} parent=55 // pred_check
          %p830 = pneg %p237
        $region58: #{_forward_impl.1} parent=55 // pred_check_branch
          %832 = sbr.rel (%p830) target = $region60
        $region59: #{_forward_impl.1} parent=55 // pred_region
          %s833 = smul.u32 2, %s25
          %s835 = ssub.s32 32, 32
          %836 = vsyncadd %s826, %s835
          %s837 = smul.addr %s833, 16
          %s838 = scalar_lea.hbm %s9, %s837
          %s840 = sshll.u32 %s829, 4
          %s841 = int_to_ptr.vmem [resolvable:$true] %s840
          %843 = dma.vmem_to_hbm [thread:$0]  %s841, 32, %s838, %s826
        $region60: #{_forward_impl.1} parent=55 // pred_fallthru
          _
      $region56: #{_forward_impl.1} parent=5 // pred_fallthru
        _
      %p844 = scmp.le.s32.totalorder 2, %s20
      // Predicated region
      $region61: #{_forward_impl.1} parent=5 // pred_check
        %p845 = pneg %p844
      $region62: #{_forward_impl.1} parent=5 // pred_check_branch
        %847 = sbr.rel (%p845) target = $region64
      $region63: #{_forward_impl.1} parent=5 // pred_region
        %s848 = ssub.s32 %s20, 2
        // Predicated region
        $region65: #{_forward_impl.1} parent=63 // pred_check
          %p849 = pneg %p243
        $region66: #{_forward_impl.1} parent=63 // pred_check_branch
          %851 = sbr.rel (%p849) target = $region68
        $region67: #{_forward_impl.1} parent=63 // pred_region
          %s852 = sand.u32 %s228, 1
          %s853 = scalar_lea.sflag [#allocation4], %s852
          %s854 = sand.u32 %s228, 1
          %s855 = smul.addr %s854, 2
          %s856 = scalar_lea.vmem [#allocation3], %s855
          %857 = dma.done %s853, 32
        $region68: #{_forward_impl.1} parent=63 // pred_fallthru
          _
      $region64: #{_forward_impl.1} parent=5 // pred_fallthru
        _
    $region6: #{_forward_impl.1} parent=1 // loop_footer
      %s24 = sadd.s32 1, %s20
    $region7: #{_forward_impl.1} parent=1 // loop_footer_branch
      %19 = sbr.rel target = $region3
    $region8: #{_forward_impl.1} parent=1 // loop_exit
      _
    %858 = vsyncpa [#allocation4], 1
    %s859 = scalar_lea.sflag [#allocation4], 1
    %860 = vsyncpa %s859, 1

</llo_original>
